<compile_context>
chip_gen: v7x
topology: tpu7x:2x2x1
jax: 0.10.0
libtpu: 0.0.40
codegen_flags: <defaults>
</compile_context>

<pallas_src>
import jax
import jax.numpy as jnp
from jax.experimental import pallas as pl
from jax.experimental.pallas import tpu as pltpu

ENCODING_DIM = 64
HIDDEN_DIM = 128


def _cdiv(a, b):
    return -(-a // b)


def _round_up(x, m):
    return _cdiv(x, m) * m


def autoencoder_kernel(x_ref,
                       w1_ref, b1_ref,
                       w23_ref, b23_ref,
                       w4_ref, b4_ref,
                       o_ref):
    """Fused autoencoder forward for one batch tile, entirely in VMEM."""
    x = x_ref[...]

    # Encoder first layer + ReLU (f32 accumulate, f32 elementwise).
    h1 = jnp.dot(x, w1_ref[...], preferred_element_type=jnp.float32) + b1_ref[...]
    h1 = jnp.maximum(h1, 0.0)

    # Folded (encoder second linear) @ (decoder first linear) + ReLU.
    h2 = jnp.dot(h1.astype(w23_ref.dtype), w23_ref[...],
                 preferred_element_type=jnp.float32) + b23_ref[...]
    h2 = jnp.maximum(h2, 0.0)

    # Decoder output layer.
    y = jnp.dot(h2.astype(w4_ref.dtype), w4_ref[...],
                preferred_element_type=jnp.float32) + b4_ref[...]

    o_ref[...] = y.astype(o_ref.dtype)


def autoencoder_forward(x, params, *,
                        tile_m=1024,
                        weight_dtype=jnp.bfloat16,
                        out_dtype=None,
                        min_batch_tiles=2,
                        vmem_budget_bytes=40 * 1024 * 1024):
    """x: [B, D] float32. params: dict of (w1,b1,...,w4,b4). Returns [B, D].

    weight_dtype: matmul-operand dtype (default bf16; accumulation stays f32).
                  Pass None for a strict-f32 path (meets 1e-4 reference checks).
    out_dtype:    output dtype (default: x.dtype).
    tile_m:       target batch tile; clamped by the VMEM budget and batch size.
    min_batch_tiles: keep >=2 grid steps when the batch allows it, so v7x's two
                  TensorCores can both take work on the "parallel" batch axis.
    """
    B, D = x.shape
    out_dtype = x.dtype if out_dtype is None else out_dtype
    mm_dtype = jnp.float32 if weight_dtype is None else weight_dtype

    # ---- Offline param prep (would be cached per-parameter-set in real use) ----
    w1, b1 = params["w1"], params["b1"]
    w4, b4 = params["w4"], params["b4"]
    # Fold Linear(128,64) @ Linear(64,128): no nonlinearity between them. Do the
    # fold in f32 BEFORE any reduced-precision cast.
    w23 = params["w2"].astype(jnp.float32) @ params["w3"].astype(jnp.float32)
    b23 = (params["b2"].astype(jnp.float32) @ params["w3"].astype(jnp.float32)
           + params["b3"].astype(jnp.float32))

    # ---- Choose batch tile: VMEM-budgeted, sublane-aligned, minimal padding ----
    bytes_act = jnp.dtype(mm_dtype).itemsize
    bytes_out = jnp.dtype(out_dtype).itemsize
    sub = 16 if bytes_act == 2 else 8           # 16-bit dtypes pack 16 rows/vreg

    # Double-buffered weights + biases (pipeline default) charged against budget.
    w_bytes = 2 * ((D * HIDDEN_DIM * 2 + HIDDEN_DIM * HIDDEN_DIM) * bytes_act
                   + (2 * HIDDEN_DIM + D) * 4)
    # Per batch row: double-buffered x tile + out tile + f32 intermediates.
    per_row = 2 * D * bytes_act + 2 * D * bytes_out + 2 * HIDDEN_DIM * 4
    avail = max(vmem_budget_bytes - w_bytes, per_row * sub)
    tm_cap = max(sub, (avail // per_row) // sub * sub)

    tm_target = max(sub, min(tile_m, tm_cap))
    n_tiles = max(_cdiv(B, tm_target), min(min_batch_tiles, _cdiv(B, sub)))
    tm = _round_up(_cdiv(B, n_tiles), sub)
    Bp = _round_up(B, tm)

    # ---- Dtype prep + (small) batch padding. Feature dim is NOT padded. ----
    xk = x.astype(mm_dtype)
    if Bp != B:
        xk = jnp.pad(xk, ((0, Bp - B), (0, 0)))     # padded rows sliced away below
    w1k = w1.astype(mm_dtype)
    w23k = w23.astype(mm_dtype)
    w4k = w4.astype(mm_dtype)
    b1k = b1.astype(jnp.float32)
    b23k = b23.astype(jnp.float32)
    b4k = b4.astype(jnp.float32)

    grid = (Bp // tm,)

    # Small weights/biases use the same (full-array) block every grid step.
    def rep(arr):
        nd = arr.ndim
        return pl.BlockSpec(arr.shape, lambda i: (0,) * nd)

    flops = 2 * Bp * (2 * D * HIDDEN_DIM + HIDDEN_DIM * HIDDEN_DIM)
    bytes_accessed = (Bp * D * bytes_act + Bp * D * bytes_out
                      + (2 * D * HIDDEN_DIM + HIDDEN_DIM * HIDDEN_DIM) * bytes_act
                      + (2 * HIDDEN_DIM + D) * 4)

    out = pl.pallas_call(
        autoencoder_kernel,
        out_shape=jax.ShapeDtypeStruct((Bp, D), out_dtype),
        grid_spec=pltpu.PrefetchScalarGridSpec(
            num_scalar_prefetch=0,
            grid=grid,
            in_specs=[
                pl.BlockSpec((tm, D), lambda i: (i, 0)),    # x tile (full feature dim)
                rep(w1k), rep(b1k),
                rep(w23k), rep(b23k),
                rep(w4k), rep(b4k),
            ],
            out_specs=pl.BlockSpec((tm, D), lambda i: (i, 0)),
        ),
        compiler_params=pltpu.CompilerParams(
            dimension_semantics=("parallel",),   # batch tiles shard across TCs (v7x)
            vmem_limit_bytes=48 * 1024 * 1024,   # fits v7x 64 MiB; lifts v5e/v6e default
        ),
        cost_estimate=pl.CostEstimate(
            flops=int(flops), transcendentals=0, bytes_accessed=int(bytes_accessed)),
    )(xk, w1k, b1k, w23k, b23k, w4k, b4k)

    return out if Bp == B else out[:B]


def init_params(key, input_dim):
    """Deterministic init mirroring nn.Linear default (uniform +/- 1/sqrt(fan_in)).

    Weights stored as [in, out] so the kernel does x @ W + b.
    """
    dims = [
        (input_dim, HIDDEN_DIM),     # encoder[0]
        (HIDDEN_DIM, ENCODING_DIM),  # encoder[2]
        (ENCODING_DIM, HIDDEN_DIM),  # decoder[0]
        (HIDDEN_DIM, input_dim),     # decoder[2]
    ]
    params = {}
    keys = jax.random.split(key, 2 * len(dims))
    for n, (fan_in, fan_out) in enumerate(dims):
        bound = 1.0 / jnp.sqrt(float(fan_in))
        w = jax.random.uniform(keys[2 * n], (fan_in, fan_out),
                               minval=-bound, maxval=bound, dtype=jnp.float32)
        b = jax.random.uniform(keys[2 * n + 1], (1, fan_out),
                               minval=-bound, maxval=bound, dtype=jnp.float32)
        params[f"w{n + 1}"] = w
        params[f"b{n + 1}"] = b
    return params


def reference_forward(x, p):
    h = jnp.maximum(x @ p["w1"] + p["b1"], 0.0)
    z = h @ p["w2"] + p["b2"]
    h2 = jnp.maximum(z @ p["w3"] + p["b3"], 0.0)
    return h2 @ p["w4"] + p["b4"]


if __name__ == "__main__":
    key = jax.random.PRNGKey(0)
    k_data, k_params, k_data2 = jax.random.split(key, 3)

    # Small demo shapes consistent with the module (input_dim stands in for the
    # feature width of data/merged_vectors.npy; preprocessing/StandardScaler is
    # host-side and not part of the forward pass).
    batch, input_dim = 16, 256
    x = jax.random.normal(k_data, (batch, input_dim), dtype=jnp.float32)
    params = init_params(k_params, input_dim)
    ref = reference_forward(x, params)

    # Strict-f32 path for the tight reference check.
    out = jax.block_until_ready(autoencoder_forward(x, params, weight_dtype=None))
    assert out.shape == (batch, input_dim)
    assert jnp.allclose(out, ref, atol=1e-4, rtol=1e-4)

    # Default fast path: bf16 matmul operands, f32 accumulation (looser tolerance).
    out_bf16 = jax.block_until_ready(autoencoder_forward(x, params))
    assert out_bf16.shape == (batch, input_dim)
    assert jnp.allclose(out_bf16, ref, atol=1e-1, rtol=1e-1)

    # Misaligned shapes: D not a multiple of 128, B not a multiple of the tile.
    batch2, input_dim2 = 10, 200
    x2 = jax.random.normal(k_data2, (batch2, input_dim2), dtype=jnp.float32)
    params2 = init_params(k_params, input_dim2)
    out2 = jax.block_until_ready(
        autoencoder_forward(x2, params2, weight_dtype=None))
    ref2 = reference_forward(x2, params2)
    assert out2.shape == (batch2, input_dim2)
    assert jnp.allclose(out2, ref2, atol=1e-4, rtol=1e-4)

    print("KERNEL_OK")
</pallas_src>

<mosaic_0001>
module attributes {stable_mosaic.version = 11 : i64} {
  func.func @autoencoder_kernel(%arg0: i32, %arg1: memref<8x256xf32, #tpu.memory_space<vmem>>, %arg2: memref<256x128xf32, #tpu.memory_space<vmem>>, %arg3: memref<1x128xf32, #tpu.memory_space<vmem>>, %arg4: memref<128x128xf32, #tpu.memory_space<vmem>>, %arg5: memref<1x128xf32, #tpu.memory_space<vmem>>, %arg6: memref<128x256xf32, #tpu.memory_space<vmem>>, %arg7: memref<1x256xf32, #tpu.memory_space<vmem>>, %arg8: memref<8x256xf32, #tpu.memory_space<vmem>>) attributes {dimension_semantics = [#tpu.dimension_semantics<parallel>], iteration_bounds = array<i64: 2>, scalar_prefetch = 0 : i64, scratch_operands = 0 : i64, tpu.core_type = #tpu.core_type<tc>, window_params = [{transform_indices = @transform_0, window_bounds = array<i64: 8, 256>}, {pipeline_mode = #tpu.pipeline_mode<synchronous>, transform_indices = @transform_1, window_bounds = array<i64: 256, 128>}, {pipeline_mode = #tpu.pipeline_mode<synchronous>, transform_indices = @transform_2, window_bounds = array<i64: 1, 128>}, {pipeline_mode = #tpu.pipeline_mode<synchronous>, transform_indices = @transform_3, window_bounds = array<i64: 128, 128>}, {pipeline_mode = #tpu.pipeline_mode<synchronous>, transform_indices = @transform_4, window_bounds = array<i64: 1, 128>}, {pipeline_mode = #tpu.pipeline_mode<synchronous>, transform_indices = @transform_5, window_bounds = array<i64: 128, 256>}, {pipeline_mode = #tpu.pipeline_mode<synchronous>, transform_indices = @transform_6, window_bounds = array<i64: 1, 256>}, {transform_indices = @transform_7, window_bounds = array<i64: 8, 256>}]} {
    %c0 = arith.constant 0 : index
    %c0_0 = arith.constant 0 : index
    %0 = vector.load %arg1[%c0, %c0_0] : memref<8x256xf32, #tpu.memory_space<vmem>>, vector<8x256xf32>
    %c0_1 = arith.constant 0 : index
    %c0_2 = arith.constant 0 : index
    %1 = vector.load %arg2[%c0_1, %c0_2] : memref<256x128xf32, #tpu.memory_space<vmem>>, vector<256x128xf32>
    %cst = arith.constant dense<0.000000e+00> : vector<8x128xf32>
    %2 = tpu.matmul %0, %1, %cst {dimension_numbers = #tpu.dot_dimension_numbers<[1], [0], [0], [1], [0, 0, 1, 1], [], []>} : vector<8x256xf32>, vector<256x128xf32>, vector<8x128xf32> -> vector<8x128xf32>
    %c0_3 = arith.constant 0 : index
    %c0_4 = arith.constant 0 : index
    %3 = vector.load %arg3[%c0_3, %c0_4] : memref<1x128xf32, #tpu.memory_space<vmem>>, vector<1x128xf32>
    %4 = vector.broadcast %3 : vector<1x128xf32> to vector<8x128xf32>
    %5 = arith.addf %2, %4 : vector<8x128xf32>
    %cst_5 = arith.constant 0.000000e+00 : f32
    %6 = vector.broadcast %cst_5 : f32 to vector<8x128xf32>
    %7 = arith.maximumf %5, %6 : vector<8x128xf32>
    %c0_6 = arith.constant 0 : index
    %c0_7 = arith.constant 0 : index
    %8 = vector.load %arg4[%c0_6, %c0_7] : memref<128x128xf32, #tpu.memory_space<vmem>>, vector<128x128xf32>
    %cst_8 = arith.constant dense<0.000000e+00> : vector<8x128xf32>
    %9 = tpu.matmul %7, %8, %cst_8 {dimension_numbers = #tpu.dot_dimension_numbers<[1], [0], [0], [1], [0, 0, 1, 1], [], []>} : vector<8x128xf32>, vector<128x128xf32>, vector<8x128xf32> -> vector<8x128xf32>
    %c0_9 = arith.constant 0 : index
    %c0_10 = arith.constant 0 : index
    %10 = vector.load %arg5[%c0_9, %c0_10] : memref<1x128xf32, #tpu.memory_space<vmem>>, vector<1x128xf32>
    %11 = vector.broadcast %10 : vector<1x128xf32> to vector<8x128xf32>
    %12 = arith.addf %9, %11 : vector<8x128xf32>
    %cst_11 = arith.constant 0.000000e+00 : f32
    %13 = vector.broadcast %cst_11 : f32 to vector<8x128xf32>
    %14 = arith.maximumf %12, %13 : vector<8x128xf32>
    %c0_12 = arith.constant 0 : index
    %c0_13 = arith.constant 0 : index
    %15 = vector.load %arg6[%c0_12, %c0_13] : memref<128x256xf32, #tpu.memory_space<vmem>>, vector<128x256xf32>
    %cst_14 = arith.constant dense<0.000000e+00> : vector<8x256xf32>
    %16 = tpu.matmul %14, %15, %cst_14 {dimension_numbers = #tpu.dot_dimension_numbers<[1], [0], [0], [1], [0, 0, 1, 1], [], []>} : vector<8x128xf32>, vector<128x256xf32>, vector<8x256xf32> -> vector<8x256xf32>
    %c0_15 = arith.constant 0 : index
    %c0_16 = arith.constant 0 : index
    %17 = vector.load %arg7[%c0_15, %c0_16] : memref<1x256xf32, #tpu.memory_space<vmem>>, vector<1x256xf32>
    %18 = vector.broadcast %17 : vector<1x256xf32> to vector<8x256xf32>
    %19 = arith.addf %16, %18 : vector<8x256xf32>
    %c0_17 = arith.constant 0 : index
    %c0_18 = arith.constant 0 : index
    %20 = vector.load %arg8[%c0_17, %c0_18] : memref<8x256xf32, #tpu.memory_space<vmem>>, vector<8x256xf32>
    tpu.vector_store %arg8[%c0_17, %c0_18], %19 {strides = array<i32>} : memref<8x256xf32, #tpu.memory_space<vmem>>, vector<8x256xf32>,
    return
  }
  func.func @transform_0(%arg0: i32) -> (i32, i32) {
    %c0_i32 = arith.constant 0 : i32
    %c0_i32_0 = arith.constant 0 : i32
    return %arg0, %c0_i32 : i32, i32
  }
  func.func @transform_1(%arg0: i32) -> (i32, i32) {
    %c0_i32 = arith.constant 0 : i32
    %c0_i32_0 = arith.constant 0 : i32
    %c0_i32_1 = arith.constant 0 : i32
    return %c0_i32, %c0_i32_0 : i32, i32
  }
  func.func @transform_2(%arg0: i32) -> (i32, i32) {
    %c0_i32 = arith.constant 0 : i32
    %c0_i32_0 = arith.constant 0 : i32
    %c0_i32_1 = arith.constant 0 : i32
    return %c0_i32, %c0_i32_0 : i32, i32
  }
  func.func @transform_3(%arg0: i32) -> (i32, i32) {
    %c0_i32 = arith.constant 0 : i32
    %c0_i32_0 = arith.constant 0 : i32
    %c0_i32_1 = arith.constant 0 : i32
    return %c0_i32, %c0_i32_0 : i32, i32
  }
  func.func @transform_4(%arg0: i32) -> (i32, i32) {
    %c0_i32 = arith.constant 0 : i32
    %c0_i32_0 = arith.constant 0 : i32
    %c0_i32_1 = arith.constant 0 : i32
    return %c0_i32, %c0_i32_0 : i32, i32
  }
  func.func @transform_5(%arg0: i32) -> (i32, i32) {
    %c0_i32 = arith.constant 0 : i32
    %c0_i32_0 = arith.constant 0 : i32
    %c0_i32_1 = arith.constant 0 : i32
    return %c0_i32, %c0_i32_0 : i32, i32
  }
  func.func @transform_6(%arg0: i32) -> (i32, i32) {
    %c0_i32 = arith.constant 0 : i32
    %c0_i32_0 = arith.constant 0 : i32
    %c0_i32_1 = arith.constant 0 : i32
    return %c0_i32, %c0_i32_0 : i32, i32
  }
  func.func @transform_7(%arg0: i32) -> (i32, i32) {
    %c0_i32 = arith.constant 0 : i32
    %c0_i32_0 = arith.constant 0 : i32
    return %arg0, %c0_i32 : i32, i32
  }
}

</mosaic_0001>

<llo_original>
// kernel: tpu_custom_call.1
$region0: #{tpu_custom_call.1}
  #allocation0 [shape = 'u32[]', space=smem, size = 0x4, offset = 0x4, fixed_abs, tag = 'smem constant byte address 0x4 - core index']
  #allocation1 [shape = 'u32[144,128]{1,0:T(1,128)}', space=vmem, size = 0x12000, scoped, tag = 'internal scratch']
  %s0 = inlined_call_operand.hbm [shape: f32[16,256], index: 0, kind: input, shape index: {}]
  %s1 = inlined_call_operand.hbm [shape: f32[256,128], index: 1, kind: input, shape index: {}]
  %s2 = inlined_call_operand.vmem [shape: f32[1,128], index: 2, kind: input, shape index: {}]
  %s3 = inlined_call_operand.hbm [shape: f32[128,128], index: 3, kind: input, shape index: {}]
  %s4 = inlined_call_operand.vmem [shape: f32[1,128], index: 4, kind: input, shape index: {}]
  %s5 = inlined_call_operand.hbm [shape: f32[128,256], index: 5, kind: input, shape index: {}]
  %s6 = inlined_call_operand.vmem [shape: f32[1,256], index: 6, kind: input, shape index: {}]
  %s7 = inlined_call_operand.hbm [shape: f32[16,256], index: 7, kind: output, shape index: {}]
  %s8 = sld [smem:[#allocation0]]
  $region77: #{tpu_custom_call.1} parent=0
    _
  %s10 = ssub.s32 1, %s8
  %s11 = scalar_select 0, %s10, %s8
  $region1: #{tpu_custom_call.1} parent=0
    #allocation2 [shape = 'u8[16384]{0}', space=vmem, size = 0x4000, scoped, tag = 'input window, operand 0']
    #allocation3 [shape = 's32[2]{0}', space=sflag, size = 0x8, scoped, tag = 'scoped memory for tpu_custom_call.1']
    #allocation4 [shape = 's32[2]{0}', space=sflag, size = 0x8, scoped, tag = 'scoped memory for tpu_custom_call.1']
    #allocation5 [shape = 'u8[131072]{0}', space=vmem, size = 0x20000, scoped, tag = 'input window, operand 1, single buffered']
    #allocation6 [shape = 's32[1]{0}', space=sflag, size = 0x4, scoped, tag = 'scoped memory for tpu_custom_call.1']
    #allocation7 [shape = 'u8[65536]{0}', space=vmem, size = 0x10000, scoped, tag = 'input window, operand 3, single buffered']
    #allocation8 [shape = 'u8[131072]{0}', space=vmem, size = 0x20000, scoped, tag = 'input window, operand 5, single buffered']
    #allocation9 [shape = 's32[1]{0}', space=sflag, size = 0x4, scoped, tag = 'scoped memory for tpu_custom_call.1']
    #allocation10 [shape = 'u8[16384]{0}', space=vmem, size = 0x4000, scoped, tag = 'output window, operand 0']
    %12 = vsyncpa [#allocation3], 0
    %s13 = scalar_lea.sflag [#allocation3], 1
    %14 = vsyncpa %s13, 0
    %15 = vsyncpa [#allocation6], 0
    %16 = vsyncpa [#allocation9], 0
    %17 = vsyncpa [#allocation4], 0
    %s18 = scalar_lea.sflag [#allocation4], 1
    %19 = vsyncpa %s18, 0
    loop: start=0, step=1, limit=4
    $region2: #{tpu_custom_call.1} parent=1 // loop_pre_header
      _
    $region3: #{tpu_custom_call.1} parent=1 // loop_header
      %s21 = sphi 0, %s25
      %p22 = scmp.ge.s32.totalorder %s21, 4
      %s31 = sphi 0, %s33
      %s34 = sphi 0, %s31
      %s35 = sphi 0, %s34
      %s51 = sphi 0, %s35
      %s55 = sphi 0, %s55
      %s57 = sphi 0, %s55
      %s58 = sphi 0, %s57
      %s72 = sphi 0, %s58
      %s76 = sphi 0, %s76
      %s78 = sphi 0, %s76
      %s79 = sphi 0, %s78
      %s93 = sphi 0, %s79
      %s97 = sphi 0, %s97
      %s99 = sphi 0, %s97
      %s100 = sphi 0, %s99
      %s114 = sphi 0, %s100
      %s118 = sphi 0, %s118
      %s120 = sphi 0, %s118
      %s121 = sphi 0, %s120
      %s135 = sphi 0, %s121
      %s139 = sphi 0, %s139
      %s141 = sphi 0, %s139
      %s142 = sphi 0, %s141
      %s156 = sphi 0, %s142
      %s160 = sphi 0, %s160
      %s162 = sphi 0, %s160
      %s163 = sphi 0, %s162
      %s177 = sphi 0, %s163
      %s183 = sphi 0, %s185
      %s186 = sphi 0, %s183
      %s187 = sphi 0, %s186
      %s203 = sphi 0, %s187
    $region4: #{tpu_custom_call.1} parent=1 // loop_header_branch
      %24 = sbr.rel (%p22) target = $region8
    $region5: #{tpu_custom_call.1} parent=1 // loop_body
      %s26 = ssub.s32 %s21, 1
      %s27 = ssub.s32 %s21, 2
      %s28 = sadd.s32 %s21, 1
      %s29 = ssub.s32 %s21, %s28
      %p30 = scmp.eq.s32.totalorder %s29, 0
      %s32 = sadd.s32 %s31, 1
      %s33 = scalar_select %p30, %s31, %s32
      %p36 = pneg %p30
      %p37 = scmp.eq.s32.totalorder %s21, 1
      %p38 = por %p36, %p37
      %p39 = scmp.ne.s32.totalorder %s31, %s34
      %p40 = scmp.eq.s32.totalorder %s21, 0
      %p41 = por %p39, %p40
      %p42 = scmp.ne.s32.totalorder %s31, %s34
      %p43 = scmp.eq.s32.totalorder %s26, 1
      %p44 = por %p42, %p43
      %p45 = scmp.ne.s32.totalorder %s34, %s35
      %p46 = scmp.eq.s32.totalorder %s26, 0
      %p47 = por %p45, %p46
      %p48 = scmp.ne.s32.totalorder %s34, %s35
      %p49 = scmp.eq.s32.totalorder %s27, 1
      %p50 = por %p48, %p49
      %p52 = scmp.ne.s32.totalorder %s35, %s51
      %p53 = scmp.eq.s32.totalorder %s27, 0
      %p54 = por %p52, %p53
      %s56 = sadd.s32 %s55, 1
      %p59 = scmp.eq.s32.totalorder %s21, 1
      %p60 = scmp.ne.s32.totalorder %s55, %s57
      %p61 = scmp.eq.s32.totalorder %s21, 0
      %p62 = por %p60, %p61
      %p63 = scmp.ne.s32.totalorder %s55, %s57
      %p64 = scmp.eq.s32.totalorder %s26, 1
      %p65 = por %p63, %p64
      %p66 = scmp.ne.s32.totalorder %s57, %s58
      %p67 = scmp.eq.s32.totalorder %s26, 0
      %p68 = por %p66, %p67
      %p69 = scmp.ne.s32.totalorder %s57, %s58
      %p70 = scmp.eq.s32.totalorder %s27, 1
      %p71 = por %p69, %p70
      %p73 = scmp.ne.s32.totalorder %s58, %s72
      %p74 = scmp.eq.s32.totalorder %s27, 0
      %p75 = por %p73, %p74
      %s77 = sadd.s32 %s76, 1
      %p80 = scmp.eq.s32.totalorder %s21, 1
      %p81 = scmp.ne.s32.totalorder %s76, %s78
      %p82 = scmp.eq.s32.totalorder %s21, 0
      %p83 = por %p81, %p82
      %p84 = scmp.ne.s32.totalorder %s76, %s78
      %p85 = scmp.eq.s32.totalorder %s26, 1
      %p86 = por %p84, %p85
      %p87 = scmp.ne.s32.totalorder %s78, %s79
      %p88 = scmp.eq.s32.totalorder %s26, 0
      %p89 = por %p87, %p88
      %p90 = scmp.ne.s32.totalorder %s78, %s79
      %p91 = scmp.eq.s32.totalorder %s27, 1
      %p92 = por %p90, %p91
      %p94 = scmp.ne.s32.totalorder %s79, %s93
      %p95 = scmp.eq.s32.totalorder %s27, 0
      %p96 = por %p94, %p95
      %s98 = sadd.s32 %s97, 1
      %p101 = scmp.eq.s32.totalorder %s21, 1
      %p102 = scmp.ne.s32.totalorder %s97, %s99
      %p103 = scmp.eq.s32.totalorder %s21, 0
      %p104 = por %p102, %p103
      %p105 = scmp.ne.s32.totalorder %s97, %s99
      %p106 = scmp.eq.s32.totalorder %s26, 1
      %p107 = por %p105, %p106
      %p108 = scmp.ne.s32.totalorder %s99, %s100
      %p109 = scmp.eq.s32.totalorder %s26, 0
      %p110 = por %p108, %p109
      %p111 = scmp.ne.s32.totalorder %s99, %s100
      %p112 = scmp.eq.s32.totalorder %s27, 1
      %p113 = por %p111, %p112
      %p115 = scmp.ne.s32.totalorder %s100, %s114
      %p116 = scmp.eq.s32.totalorder %s27, 0
      %p117 = por %p115, %p116
      %s119 = sadd.s32 %s118, 1
      %p122 = scmp.eq.s32.totalorder %s21, 1
      %p123 = scmp.ne.s32.totalorder %s118, %s120
      %p124 = scmp.eq.s32.totalorder %s21, 0
      %p125 = por %p123, %p124
      %p126 = scmp.ne.s32.totalorder %s118, %s120
      %p127 = scmp.eq.s32.totalorder %s26, 1
      %p128 = por %p126, %p127
      %p129 = scmp.ne.s32.totalorder %s120, %s121
      %p130 = scmp.eq.s32.totalorder %s26, 0
      %p131 = por %p129, %p130
      %p132 = scmp.ne.s32.totalorder %s120, %s121
      %p133 = scmp.eq.s32.totalorder %s27, 1
      %p134 = por %p132, %p133
      %p136 = scmp.ne.s32.totalorder %s121, %s135
      %p137 = scmp.eq.s32.totalorder %s27, 0
      %p138 = por %p136, %p137
      %s140 = sadd.s32 %s139, 1
      %p143 = scmp.eq.s32.totalorder %s21, 1
      %p144 = scmp.ne.s32.totalorder %s139, %s141
      %p145 = scmp.eq.s32.totalorder %s21, 0
      %p146 = por %p144, %p145
      %p147 = scmp.ne.s32.totalorder %s139, %s141
      %p148 = scmp.eq.s32.totalorder %s26, 1
      %p149 = por %p147, %p148
      %p150 = scmp.ne.s32.totalorder %s141, %s142
      %p151 = scmp.eq.s32.totalorder %s26, 0
      %p152 = por %p150, %p151
      %p153 = scmp.ne.s32.totalorder %s141, %s142
      %p154 = scmp.eq.s32.totalorder %s27, 1
      %p155 = por %p153, %p154
      %p157 = scmp.ne.s32.totalorder %s142, %s156
      %p158 = scmp.eq.s32.totalorder %s27, 0
      %p159 = por %p157, %p158
      %s161 = sadd.s32 %s160, 1
      %p164 = scmp.eq.s32.totalorder %s21, 1
      %p165 = scmp.ne.s32.totalorder %s160, %s162
      %p166 = scmp.eq.s32.totalorder %s21, 0
      %p167 = por %p165, %p166
      %p168 = scmp.ne.s32.totalorder %s160, %s162
      %p169 = scmp.eq.s32.totalorder %s26, 1
      %p170 = por %p168, %p169
      %p171 = scmp.ne.s32.totalorder %s162, %s163
      %p172 = scmp.eq.s32.totalorder %s26, 0
      %p173 = por %p171, %p172
      %p174 = scmp.ne.s32.totalorder %s162, %s163
      %p175 = scmp.eq.s32.totalorder %s27, 1
      %p176 = por %p174, %p175
      %p178 = scmp.ne.s32.totalorder %s163, %s177
      %p179 = scmp.eq.s32.totalorder %s27, 0
      %p180 = por %p178, %p179
      %s181 = ssub.s32 %s21, %s28
      %p182 = scmp.eq.s32.totalorder %s181, 0
      %s184 = sadd.s32 %s183, 1
      %s185 = scalar_select %p182, %s183, %s184
      %p188 = pneg %p182
      %p189 = scmp.eq.s32.totalorder %s21, 1
      %p190 = por %p188, %p189
      %p191 = scmp.ne.s32.totalorder %s183, %s186
      %p192 = scmp.eq.s32.totalorder %s21, 0
      %p193 = por %p191, %p192
      %p194 = scmp.ne.s32.totalorder %s183, %s186
      %p195 = scmp.eq.s32.totalorder %s26, 1
      %p196 = por %p194, %p195
      %p197 = scmp.ne.s32.totalorder %s186, %s187
      %p198 = scmp.eq.s32.totalorder %s26, 0
      %p199 = por %p197, %p198
      %p200 = scmp.ne.s32.totalorder %s186, %s187
      %p201 = scmp.eq.s32.totalorder %s27, 1
      %p202 = por %p200, %p201
      %p204 = scmp.ne.s32.totalorder %s187, %s203
      %p205 = scmp.eq.s32.totalorder %s27, 0
      %p206 = por %p204, %p205
      %p207 = scmp.le.s32.totalorder 1, %s21
      %p208 = scmp.lt.s32.totalorder %s21, 3
      %p209 = pnand %p207, %p208
      %p210 = pneg %p209
      // Predicated region
      $region9: #{tpu_custom_call.1} parent=5 // pred_check
        _
      $region10: #{tpu_custom_call.1} parent=5 // pred_check_branch
        %212 = sbr.rel (%p209) target = $region12
      $region11: #{tpu_custom_call.1} parent=5 // pred_region
        %s213 = ssub.s32 %s21, 1
        // Predicated region
        $region13: #{tpu_custom_call.1} parent=11 // pred_check
          %p214 = pneg %p68
        $region14: #{tpu_custom_call.1} parent=11 // pred_check_branch
          %216 = sbr.rel (%p214) target = $region16
        $region15: #{tpu_custom_call.1} parent=11 // pred_region
          %s218 = ssub.s32 4096, 4096
          %219 = vsyncadd [#allocation6], %s218
          %s220 = sshll.u32 [#allocation5], 4
          %s221 = int_to_ptr.vmem [resolvable:$true] %s220
          %226 = dma.hbm_to_vmem [thread:$0]  %s1, 4096, %s221, [#allocation6], 128, 128, 8
        $region16: #{tpu_custom_call.1} parent=11 // pred_fallthru
          _
        // Predicated region
        $region17: #{tpu_custom_call.1} parent=11 // pred_check
          %p227 = pneg %p89
        $region18: #{tpu_custom_call.1} parent=11 // pred_check_branch
          %229 = sbr.rel (%p227) target = $region20
        $region19: #{tpu_custom_call.1} parent=11 // pred_region
          _
        $region20: #{tpu_custom_call.1} parent=11 // pred_fallthru
          _
        // Predicated region
        $region21: #{tpu_custom_call.1} parent=11 // pred_check
          %p230 = pneg %p110
        $region22: #{tpu_custom_call.1} parent=11 // pred_check_branch
          %232 = sbr.rel (%p230) target = $region24
        $region23: #{tpu_custom_call.1} parent=11 // pred_region
          %s234 = ssub.s32 2048, 2048
          %235 = vsyncadd [#allocation6], %s234
          %s236 = sshll.u32 [#allocation7], 4
          %s237 = int_to_ptr.vmem [resolvable:$true] %s236
          %242 = dma.hbm_to_vmem [thread:$0]  %s3, 2048, %s237, [#allocation6], 128, 128, 8
        $region24: #{tpu_custom_call.1} parent=11 // pred_fallthru
          _
        // Predicated region
        $region25: #{tpu_custom_call.1} parent=11 // pred_check
          %p243 = pneg %p131
        $region26: #{tpu_custom_call.1} parent=11 // pred_check_branch
          %245 = sbr.rel (%p243) target = $region28
        $region27: #{tpu_custom_call.1} parent=11 // pred_region
          _
        $region28: #{tpu_custom_call.1} parent=11 // pred_fallthru
          _
        // Predicated region
        $region29: #{tpu_custom_call.1} parent=11 // pred_check
          %p246 = pneg %p152
        $region30: #{tpu_custom_call.1} parent=11 // pred_check_branch
          %248 = sbr.rel (%p246) target = $region32
        $region31: #{tpu_custom_call.1} parent=11 // pred_region
          %s250 = ssub.s32 4096, 4096
          %251 = vsyncadd [#allocation9], %s250
          %s252 = sshll.u32 [#allocation8], 4
          %s253 = int_to_ptr.vmem [resolvable:$true] %s252
          %258 = dma.hbm_to_vmem [thread:$0]  %s5, 4096, %s253, [#allocation9], 256, 256, 16
        $region32: #{tpu_custom_call.1} parent=11 // pred_fallthru
          _
        // Predicated region
        $region33: #{tpu_custom_call.1} parent=11 // pred_check
          %p259 = pneg %p173
        $region34: #{tpu_custom_call.1} parent=11 // pred_check_branch
          %261 = sbr.rel (%p259) target = $region36
        $region35: #{tpu_custom_call.1} parent=11 // pred_region
          _
        $region36: #{tpu_custom_call.1} parent=11 // pred_fallthru
          _
      $region12: #{tpu_custom_call.1} parent=5 // pred_fallthru
        _
      %p262 = scmp.lt.s32.totalorder %s21, 2
      // Predicated region
      $region37: #{tpu_custom_call.1} parent=5 // pred_check
        %p263 = pneg %p262
      $region38: #{tpu_custom_call.1} parent=5 // pred_check_branch
        %265 = sbr.rel (%p263) target = $region40
      $region39: #{tpu_custom_call.1} parent=5 // pred_region
        // Predicated region
        $region41: #{tpu_custom_call.1} parent=39 // pred_check
          %p266 = pneg %p41
        $region42: #{tpu_custom_call.1} parent=39 // pred_check_branch
          %268 = sbr.rel (%p266) target = $region44
        $region43: #{tpu_custom_call.1} parent=39 // pred_region
          %s269 = sand.u32 %s31, 1
          %s270 = scalar_lea.sflag [#allocation3], %s269
          %s271 = sand.u32 %s31, 1
          %s272 = smul.addr %s271, 16
          %s273 = scalar_lea.vmem [#allocation2], %s272
          %s275 = ssub.s32 256, 256
          %276 = vsyncadd %s270, %s275
          %s277 = smul.addr %s21, 2
          %s278 = smul.addr %s277, 128
          %s279 = scalar_lea.hbm %s0, %s278
          %s281 = sshll.u32 %s273, 4
          %s282 = int_to_ptr.vmem [resolvable:$true] %s281
          %284 = dma.hbm_to_vmem [thread:$0]  %s279, 256, %s282, %s270
        $region44: #{tpu_custom_call.1} parent=39 // pred_fallthru
          _
      $region40: #{tpu_custom_call.1} parent=5 // pred_fallthru
        _
      %p285 = scmp.le.s32.totalorder 1, %s21
      %p286 = scmp.lt.s32.totalorder %s21, 3
      %p287 = pnand %p285, %p286
      %p288 = pneg %p287
      // Predicated region
      $region45: #{tpu_custom_call.1} parent=5 // pred_check
        _
      $region46: #{tpu_custom_call.1} parent=5 // pred_check_branch
        %290 = sbr.rel (%p287) target = $region48
      $region47: #{tpu_custom_call.1} parent=5 // pred_region
        %s291 = ssub.s32 %s21, 1
        %s292 = sand.u32 %s34, 1
        %s293 = scalar_lea.sflag [#allocation3], %s292
        %s294 = sand.u32 %s34, 1
        %s295 = smul.addr %s294, 16
        %s296 = scalar_lea.vmem [#allocation2], %s295
        // Predicated region
        $region49: #{tpu_custom_call.1} parent=47 // pred_check
          %p297 = pneg %p47
        $region50: #{tpu_custom_call.1} parent=47 // pred_check_branch
          %299 = sbr.rel (%p297) target = $region52
        $region51: #{tpu_custom_call.1} parent=47 // pred_region
          %300 = dma.done %s293, 256
        $region52: #{tpu_custom_call.1} parent=47 // pred_fallthru
          _
        // Predicated region
        $region53: #{tpu_custom_call.1} parent=47 // pred_check
          %p301 = pneg %p68
        $region54: #{tpu_custom_call.1} parent=47 // pred_check_branch
          %303 = sbr.rel (%p301) target = $region56
        $region55: #{tpu_custom_call.1} parent=47 // pred_region
          %304 = dma.done [#allocation6], 4096
        $region56: #{tpu_custom_call.1} parent=47 // pred_fallthru
          _
        // Predicated region
        $region57: #{tpu_custom_call.1} parent=47 // pred_check
          %p305 = pneg %p110
        $region58: #{tpu_custom_call.1} parent=47 // pred_check_branch
          %307 = sbr.rel (%p305) target = $region60
        $region59: #{tpu_custom_call.1} parent=47 // pred_region
          %308 = dma.done [#allocation6], 2048
        $region60: #{tpu_custom_call.1} parent=47 // pred_fallthru
          _
        // Predicated region
        $region61: #{tpu_custom_call.1} parent=47 // pred_check
          %p309 = pneg %p152
        $region62: #{tpu_custom_call.1} parent=47 // pred_check_branch
          %311 = sbr.rel (%p309) target = $region64
        $region63: #{tpu_custom_call.1} parent=47 // pred_region
          %312 = dma.done [#allocation9], 4096
        $region64: #{tpu_custom_call.1} parent=47 // pred_fallthru
          _
        %s313 = sand.u32 %s34, 1
        %s314 = scalar_lea.sflag [#allocation3], %s313
        %s315 = sand.u32 %s34, 1
        %s316 = smul.addr %s315, 16
        %s317 = scalar_lea.vmem [#allocation2], %s316
        %p318 = pneg %p47
        %p319 = pneg %p44
        %p320 = pneg %p68
        %p321 = pneg %p65
        %p322 = pneg %p89
        %p323 = pneg %p86
        %p324 = pneg %p110
        %p325 = pneg %p107
        %p326 = pneg %p131
        %p327 = pneg %p128
        %p328 = pneg %p152
        %p329 = pneg %p149
        %p330 = pneg %p173
        %p331 = pneg %p170
        %p332 = pneg %p199
        %p333 = pneg %p196
        %s334 = sand.u32 %s186, 1
        %s335 = scalar_lea.sflag [#allocation4], %s334
        %s336 = sand.u32 %s186, 1
        %s337 = smul.addr %s336, 16
        %s338 = scalar_lea.vmem [#allocation10], %s337
        %v339 = vld [vmem:[%s296] sm:$0xff]
        %v340 = vld [vmem:[%s296 + $0x8] sm:$0xff]
        %v341 = vld [vmem:[#allocation5] sm:$0xff]
        %v342 = vld [vmem:[#allocation5 + $0x8] sm:$0xff]
        %v343 = vld [vmem:[#allocation5 + $0x10] sm:$0xff]
        %v344 = vld [vmem:[#allocation5 + $0x18] sm:$0xff]
        %v345 = vld [vmem:[#allocation5 + $0x20] sm:$0xff]
        %v346 = vld [vmem:[#allocation5 + $0x28] sm:$0xff]
        %v347 = vld [vmem:[#allocation5 + $0x30] sm:$0xff]
        %v348 = vld [vmem:[#allocation5 + $0x38] sm:$0xff]
        %v349 = vld [vmem:[#allocation5 + $0x40] sm:$0xff]
        %v350 = vld [vmem:[#allocation5 + $0x48] sm:$0xff]
        %v351 = vld [vmem:[#allocation5 + $0x50] sm:$0xff]
        %v352 = vld [vmem:[#allocation5 + $0x58] sm:$0xff]
        %v353 = vld [vmem:[#allocation5 + $0x60] sm:$0xff]
        %v354 = vld [vmem:[#allocation5 + $0x68] sm:$0xff]
        %v355 = vld [vmem:[#allocation5 + $0x70] sm:$0xff]
        %v356 = vld [vmem:[#allocation5 + $0x78] sm:$0xff]
        %v357 = vld [vmem:[#allocation5 + $0x80] sm:$0xff]
        %v358 = vld [vmem:[#allocation5 + $0x88] sm:$0xff]
        %v359 = vld [vmem:[#allocation5 + $0x90] sm:$0xff]
        %v360 = vld [vmem:[#allocation5 + $0x98] sm:$0xff]
        %v361 = vld [vmem:[#allocation5 + $0xa0] sm:$0xff]
        %v362 = vld [vmem:[#allocation5 + $0xa8] sm:$0xff]
        %v363 = vld [vmem:[#allocation5 + $0xb0] sm:$0xff]
        %v364 = vld [vmem:[#allocation5 + $0xb8] sm:$0xff]
        %v365 = vld [vmem:[#allocation5 + $0xc0] sm:$0xff]
        %v366 = vld [vmem:[#allocation5 + $0xc8] sm:$0xff]
        %v367 = vld [vmem:[#allocation5 + $0xd0] sm:$0xff]
        %v368 = vld [vmem:[#allocation5 + $0xd8] sm:$0xff]
        %v369 = vld [vmem:[#allocation5 + $0xe0] sm:$0xff]
        %v370 = vld [vmem:[#allocation5 + $0xe8] sm:$0xff]
        %v371 = vld [vmem:[#allocation5 + $0xf0] sm:$0xff]
        %v372 = vld [vmem:[#allocation5 + $0xf8] sm:$0xff]
        %v373 = vld [vmem:[%s2] sm:$0x1]
        %v375 = vlaneseq
        %v376 = vshrl.u32 %v375, 7
        %v377 = vsub.s32 0, %v376
        %v378 = vrot.slane %v373, %v377
        %380 = vmatprep.subr.mxu0 0.0
        %381 = vmatpush1.msra.mxu0 %v341
        %382 = vmatprep.subr.mxu0 0.0
        %383 = vmatpush1.msra.mxu0 %v342
        %384 = vmatprep.subr.mxu0 0.0
        %385 = vmatpush1.msra.mxu0 %v343
        %386 = vmatprep.subr.mxu0 0.0
        %387 = vmatpush1.msra.mxu0 %v344
        %388 = vmatprep.subr.mxu0 0.0
        %389 = vmatpush1.msra.mxu0 %v345
        %390 = vmatprep.subr.mxu0 0.0
        %391 = vmatpush1.msra.mxu0 %v346
        %392 = vmatprep.subr.mxu0 0.0
        %393 = vmatpush1.msra.mxu0 %v347
        %394 = vmatprep.subr.mxu0 0.0
        %395 = vmatpush1.msra.mxu0 %v348
        %396 = vmatprep.subr.mxu0 0.0
        %397 = vmatpush1.msra.mxu0 %v349
        %398 = vmatprep.subr.mxu0 0.0
        %399 = vmatpush1.msra.mxu0 %v350
        %400 = vmatprep.subr.mxu0 0.0
        %401 = vmatpush1.msra.mxu0 %v351
        %402 = vmatprep.subr.mxu0 0.0
        %403 = vmatpush1.msra.mxu0 %v352
        %404 = vmatprep.subr.mxu0 0.0
        %405 = vmatpush1.msra.mxu0 %v353
        %406 = vmatprep.subr.mxu0 0.0
        %407 = vmatpush1.msra.mxu0 %v354
        %408 = vmatprep.subr.mxu0 0.0
        %409 = vmatpush1.msra.mxu0 %v355
        %410 = vmatprep.subr.mxu0 0.0
        %411 = vmatpush1.msra.mxu0 %v356
        %412 = vmatprep.subr.mxu0 0.0
        %413 = vmatpush1.msra.mxu0 %v357
        %414 = vmatprep.subr.mxu0 0.0
        %415 = vmatpush1.msra.mxu0 %v358
        %416 = vmatprep.subr.mxu0 0.0
        %417 = vmatpush1.msra.mxu0 %v359
        %418 = vmatprep.subr.mxu0 0.0
        %419 = vmatpush1.msra.mxu0 %v360
        %420 = vmatprep.subr.mxu0 0.0
        %421 = vmatpush1.msra.mxu0 %v361
        %422 = vmatprep.subr.mxu0 0.0
        %423 = vmatpush1.msra.mxu0 %v362
        %424 = vmatprep.subr.mxu0 0.0
        %425 = vmatpush1.msra.mxu0 %v363
        %426 = vmatprep.subr.mxu0 0.0
        %427 = vmatpush1.msra.mxu0 %v364
        %428 = vmatprep.subr.mxu0 0.0
        %429 = vmatpush1.msra.mxu0 %v365
        %430 = vmatprep.subr.mxu0 0.0
        %431 = vmatpush1.msra.mxu0 %v366
        %432 = vmatprep.subr.mxu0 0.0
        %433 = vmatpush1.msra.mxu0 %v367
        %434 = vmatprep.subr.mxu0 0.0
        %435 = vmatpush1.msra.mxu0 %v368
        %436 = vmatprep.subr.mxu0 0.0
        %437 = vmatpush1.msra.mxu0 %v369
        %438 = vmatprep.subr.mxu0 0.0
        %439 = vmatpush1.msra.mxu0 %v370
        %440 = vmatprep.subr.mxu0 0.0
        %441 = vmatpush1.msra.mxu0 %v371
        %442 = vmatprep.subr.mxu0 0.0
        %443 = vmatpush1.msra.mxu0 %v372
        %444 = vmatprep.mubr.f32.mxu0 %v340
        %445 = vmatmul.mubr.f32.gmra.mrb[0].mxu0 %v339
        %v446 = vpop.f32.mrb[0].mxu0
        %v447 = vadd.f32 %v378, %v446
        %v448 = vpop.f32.mrb[0].mxu0
        %449 = vdwg.mxu0
        %v450 = vmax.f32 %v447, 0.0
        %v451 = vld [vmem:[#allocation7] sm:$0xff]
        %v452 = vld [vmem:[#allocation7 + $0x8] sm:$0xff]
        %v453 = vld [vmem:[#allocation7 + $0x10] sm:$0xff]
        %v454 = vld [vmem:[#allocation7 + $0x18] sm:$0xff]
        %v455 = vld [vmem:[#allocation7 + $0x20] sm:$0xff]
        %v456 = vld [vmem:[#allocation7 + $0x28] sm:$0xff]
        %v457 = vld [vmem:[#allocation7 + $0x30] sm:$0xff]
        %v458 = vld [vmem:[#allocation7 + $0x38] sm:$0xff]
        %v459 = vld [vmem:[#allocation7 + $0x40] sm:$0xff]
        %v460 = vld [vmem:[#allocation7 + $0x48] sm:$0xff]
        %v461 = vld [vmem:[#allocation7 + $0x50] sm:$0xff]
        %v462 = vld [vmem:[#allocation7 + $0x58] sm:$0xff]
        %v463 = vld [vmem:[#allocation7 + $0x60] sm:$0xff]
        %v464 = vld [vmem:[#allocation7 + $0x68] sm:$0xff]
        %v465 = vld [vmem:[#allocation7 + $0x70] sm:$0xff]
        %v466 = vld [vmem:[#allocation7 + $0x78] sm:$0xff]
        %v467 = vld [vmem:[%s4] sm:$0x1]
        %v469 = vlaneseq
        %v470 = vshrl.u32 %v469, 7
        %v471 = vsub.s32 0, %v470
        %v472 = vrot.slane %v467, %v471
        %474 = vmatprep.subr.mxu0 0.0
        %475 = vmatpush1.msra.mxu0 %v451
        %476 = vmatprep.subr.mxu0 0.0
        %477 = vmatpush1.msra.mxu0 %v452
        %478 = vmatprep.subr.mxu0 0.0
        %479 = vmatpush1.msra.mxu0 %v453
        %480 = vmatprep.subr.mxu0 0.0
        %481 = vmatpush1.msra.mxu0 %v454
        %482 = vmatprep.subr.mxu0 0.0
        %483 = vmatpush1.msra.mxu0 %v455
        %484 = vmatprep.subr.mxu0 0.0
        %485 = vmatpush1.msra.mxu0 %v456
        %486 = vmatprep.subr.mxu0 0.0
        %487 = vmatpush1.msra.mxu0 %v457
        %488 = vmatprep.subr.mxu0 0.0
        %489 = vmatpush1.msra.mxu0 %v458
        %490 = vmatprep.subr.mxu0 0.0
        %491 = vmatpush1.msra.mxu0 %v459
        %492 = vmatprep.subr.mxu0 0.0
        %493 = vmatpush1.msra.mxu0 %v460
        %494 = vmatprep.subr.mxu0 0.0
        %495 = vmatpush1.msra.mxu0 %v461
        %496 = vmatprep.subr.mxu0 0.0
        %497 = vmatpush1.msra.mxu0 %v462
        %498 = vmatprep.subr.mxu0 0.0
        %499 = vmatpush1.msra.mxu0 %v463
        %500 = vmatprep.subr.mxu0 0.0
        %501 = vmatpush1.msra.mxu0 %v464
        %502 = vmatprep.subr.mxu0 0.0
        %503 = vmatpush1.msra.mxu0 %v465
        %504 = vmatprep.subr.mxu0 0.0
        %505 = vmatpush1.msra.mxu0 %v466
        %506 = vmatprep.subr.mxu0 0.0
        %507 = vmatpush1.msra.mxu0 0.0
        %508 = vmatprep.subr.mxu0 0.0
        %509 = vmatpush1.msra.mxu0 0.0
        %510 = vmatprep.subr.mxu0 0.0
        %511 = vmatpush1.msra.mxu0 0.0
        %512 = vmatprep.subr.mxu0 0.0
        %513 = vmatpush1.msra.mxu0 0.0
        %514 = vmatprep.subr.mxu0 0.0
        %515 = vmatpush1.msra.mxu0 0.0
        %516 = vmatprep.subr.mxu0 0.0
        %517 = vmatpush1.msra.mxu0 0.0
        %518 = vmatprep.subr.mxu0 0.0
        %519 = vmatpush1.msra.mxu0 0.0
        %520 = vmatprep.subr.mxu0 0.0
        %521 = vmatpush1.msra.mxu0 0.0
        %522 = vmatprep.subr.mxu0 0.0
        %523 = vmatpush1.msra.mxu0 0.0
        %524 = vmatprep.subr.mxu0 0.0
        %525 = vmatpush1.msra.mxu0 0.0
        %526 = vmatprep.subr.mxu0 0.0
        %527 = vmatpush1.msra.mxu0 0.0
        %528 = vmatprep.subr.mxu0 0.0
        %529 = vmatpush1.msra.mxu0 0.0
        %530 = vmatprep.subr.mxu0 0.0
        %531 = vmatpush1.msra.mxu0 0.0
        %532 = vmatprep.subr.mxu0 0.0
        %533 = vmatpush1.msra.mxu0 0.0
        %534 = vmatprep.subr.mxu0 0.0
        %535 = vmatpush1.msra.mxu0 0.0
        %536 = vmatprep.subr.mxu0 0.0
        %537 = vmatpush1.msra.mxu0 0.0
        %538 = vmatprep.mubr.f32.mxu0 0.0
        %539 = vmatmul.mubr.f32.gmra.mrb[0].mxu0 %v450
        %v540 = vpop.f32.mrb[0].mxu0
        %v541 = vadd.f32 %v472, %v540
        %v542 = vpop.f32.mrb[0].mxu0
        %543 = vdwg.mxu0
        %v544 = vmax.f32 %v541, 0.0
        %v545 = vld [vmem:[#allocation8] sm:$0xff]
        %v546 = vld [vmem:[#allocation8 + $0x8] sm:$0xff]
        %v547 = vld [vmem:[#allocation8 + $0x10] sm:$0xff]
        %v548 = vld [vmem:[#allocation8 + $0x18] sm:$0xff]
        %v549 = vld [vmem:[#allocation8 + $0x20] sm:$0xff]
        %v550 = vld [vmem:[#allocation8 + $0x28] sm:$0xff]
        %v551 = vld [vmem:[#allocation8 + $0x30] sm:$0xff]
        %v552 = vld [vmem:[#allocation8 + $0x38] sm:$0xff]
        %v553 = vld [vmem:[#allocation8 + $0x40] sm:$0xff]
        %v554 = vld [vmem:[#allocation8 + $0x48] sm:$0xff]
        %v555 = vld [vmem:[#allocation8 + $0x50] sm:$0xff]
        %v556 = vld [vmem:[#allocation8 + $0x58] sm:$0xff]
        %v557 = vld [vmem:[#allocation8 + $0x60] sm:$0xff]
        %v558 = vld [vmem:[#allocation8 + $0x68] sm:$0xff]
        %v559 = vld [vmem:[#allocation8 + $0x70] sm:$0xff]
        %v560 = vld [vmem:[#allocation8 + $0x78] sm:$0xff]
        %v561 = vld [vmem:[#allocation8 + $0x80] sm:$0xff]
        %v562 = vld [vmem:[#allocation8 + $0x88] sm:$0xff]
        %v563 = vld [vmem:[#allocation8 + $0x90] sm:$0xff]
        %v564 = vld [vmem:[#allocation8 + $0x98] sm:$0xff]
        %v565 = vld [vmem:[#allocation8 + $0xa0] sm:$0xff]
        %v566 = vld [vmem:[#allocation8 + $0xa8] sm:$0xff]
        %v567 = vld [vmem:[#allocation8 + $0xb0] sm:$0xff]
        %v568 = vld [vmem:[#allocation8 + $0xb8] sm:$0xff]
        %v569 = vld [vmem:[#allocation8 + $0xc0] sm:$0xff]
        %v570 = vld [vmem:[#allocation8 + $0xc8] sm:$0xff]
        %v571 = vld [vmem:[#allocation8 + $0xd0] sm:$0xff]
        %v572 = vld [vmem:[#allocation8 + $0xd8] sm:$0xff]
        %v573 = vld [vmem:[#allocation8 + $0xe0] sm:$0xff]
        %v574 = vld [vmem:[#allocation8 + $0xe8] sm:$0xff]
        %v575 = vld [vmem:[#allocation8 + $0xf0] sm:$0xff]
        %v576 = vld [vmem:[#allocation8 + $0xf8] sm:$0xff]
        %v577 = vld [vmem:[%s6] sm:$0x3]
        %v579 = vlaneseq
        %v580 = vshrl.u32 %v579, 7
        %v581 = vsub.s32 0, %v580
        %v582 = vrot.slane %v577, %v581
        %v583 = vlaneseq
        %v584 = vshrl.u32 %v583, 7
        %v585 = vsub.s32 1, %v584
        %v586 = vrot.slane %v577, %v585
        %589 = vmatprep.subr.mxu0 %v546
        %590 = vmatpush1.msra.mxu0 %v545
        %591 = vmatprep.subr.mxu0 %v548
        %592 = vmatpush1.msra.mxu0 %v547
        %593 = vmatprep.subr.mxu0 %v550
        %594 = vmatpush1.msra.mxu0 %v549
        %595 = vmatprep.subr.mxu0 %v552
        %596 = vmatpush1.msra.mxu0 %v551
        %597 = vmatprep.subr.mxu0 %v554
        %598 = vmatpush1.msra.mxu0 %v553
        %599 = vmatprep.subr.mxu0 %v556
        %600 = vmatpush1.msra.mxu0 %v555
        %601 = vmatprep.subr.mxu0 %v558
        %602 = vmatpush1.msra.mxu0 %v557
        %603 = vmatprep.subr.mxu0 %v560
        %604 = vmatpush1.msra.mxu0 %v559
        %605 = vmatprep.subr.mxu0 %v562
        %606 = vmatpush1.msra.mxu0 %v561
        %607 = vmatprep.subr.mxu0 %v564
        %608 = vmatpush1.msra.mxu0 %v563
        %609 = vmatprep.subr.mxu0 %v566
        %610 = vmatpush1.msra.mxu0 %v565
        %611 = vmatprep.subr.mxu0 %v568
        %612 = vmatpush1.msra.mxu0 %v567
        %613 = vmatprep.subr.mxu0 %v570
        %614 = vmatpush1.msra.mxu0 %v569
        %615 = vmatprep.subr.mxu0 %v572
        %616 = vmatpush1.msra.mxu0 %v571
        %617 = vmatprep.subr.mxu0 %v574
        %618 = vmatpush1.msra.mxu0 %v573
        %619 = vmatprep.subr.mxu0 %v576
        %620 = vmatpush1.msra.mxu0 %v575
        %621 = vmatprep.subr.mxu0 0.0
        %622 = vmatpush1.msra.mxu0 0.0
        %623 = vmatprep.subr.mxu0 0.0
        %624 = vmatpush1.msra.mxu0 0.0
        %625 = vmatprep.subr.mxu0 0.0
        %626 = vmatpush1.msra.mxu0 0.0
        %627 = vmatprep.subr.mxu0 0.0
        %628 = vmatpush1.msra.mxu0 0.0
        %629 = vmatprep.subr.mxu0 0.0
        %630 = vmatpush1.msra.mxu0 0.0
        %631 = vmatprep.subr.mxu0 0.0
        %632 = vmatpush1.msra.mxu0 0.0
        %633 = vmatprep.subr.mxu0 0.0
        %634 = vmatpush1.msra.mxu0 0.0
        %635 = vmatprep.subr.mxu0 0.0
        %636 = vmatpush1.msra.mxu0 0.0
        %637 = vmatprep.subr.mxu0 0.0
        %638 = vmatpush1.msra.mxu0 0.0
        %639 = vmatprep.subr.mxu0 0.0
        %640 = vmatpush1.msra.mxu0 0.0
        %641 = vmatprep.subr.mxu0 0.0
        %642 = vmatpush1.msra.mxu0 0.0
        %643 = vmatprep.subr.mxu0 0.0
        %644 = vmatpush1.msra.mxu0 0.0
        %645 = vmatprep.subr.mxu0 0.0
        %646 = vmatpush1.msra.mxu0 0.0
        %647 = vmatprep.subr.mxu0 0.0
        %648 = vmatpush1.msra.mxu0 0.0
        %649 = vmatprep.subr.mxu0 0.0
        %650 = vmatpush1.msra.mxu0 0.0
        %651 = vmatprep.subr.mxu0 0.0
        %652 = vmatpush1.msra.mxu0 0.0
        %653 = vmatprep.mubr.f32.mxu0 0.0
        %654 = vmatmul.mubr.f32.gmra.mrb[0].mxu0 %v544
        %v655 = vpop.f32.mrb[0].mxu0
        %v656 = vadd.f32 %v582, %v655
        %v657 = vpop.f32.mrb[0].mxu0
        %v658 = vadd.f32 %v586, %v657
        %659 = vdwg.mxu0
        %660 = vst [vmem:[%s338] sm:$0xff] %v656
        %661 = vst [vmem:[%s338 + $0x8] sm:$0xff] %v658
        %s662 = sand.u32 %s186, 1
        %s663 = scalar_lea.sflag [#allocation4], %s662
        %s664 = sand.u32 %s186, 1
        %s665 = smul.addr %s664, 16
        %s666 = scalar_lea.vmem [#allocation10], %s665
        // Predicated region
        $region65: #{tpu_custom_call.1} parent=47 // pred_check
          %p667 = pneg %p196
        $region66: #{tpu_custom_call.1} parent=47 // pred_check_branch
          %669 = sbr.rel (%p667) target = $region68
        $region67: #{tpu_custom_call.1} parent=47 // pred_region
          %s671 = ssub.s32 256, 256
          %672 = vsyncadd %s663, %s671
          %s673 = smul.addr %s26, 2
          %s674 = smul.addr %s673, 128
          %s675 = scalar_lea.hbm %s7, %s674
          %s677 = sshll.u32 %s666, 4
          %s678 = int_to_ptr.vmem [resolvable:$true] %s677
          %680 = dma.vmem_to_hbm [thread:$0]  %s678, 256, %s675, %s663
        $region68: #{tpu_custom_call.1} parent=47 // pred_fallthru
          _
      $region48: #{tpu_custom_call.1} parent=5 // pred_fallthru
        _
      %p681 = scmp.le.s32.totalorder 2, %s21
      // Predicated region
      $region69: #{tpu_custom_call.1} parent=5 // pred_check
        %p682 = pneg %p681
      $region70: #{tpu_custom_call.1} parent=5 // pred_check_branch
        %684 = sbr.rel (%p682) target = $region72
      $region71: #{tpu_custom_call.1} parent=5 // pred_region
        %s685 = ssub.s32 %s21, 2
        // Predicated region
        $region73: #{tpu_custom_call.1} parent=71 // pred_check
          %p686 = pneg %p202
        $region74: #{tpu_custom_call.1} parent=71 // pred_check_branch
          %688 = sbr.rel (%p686) target = $region76
        $region75: #{tpu_custom_call.1} parent=71 // pred_region
          %s689 = sand.u32 %s187, 1
          %s690 = scalar_lea.sflag [#allocation4], %s689
          %s691 = sand.u32 %s187, 1
          %s692 = smul.addr %s691, 16
          %s693 = scalar_lea.vmem [#allocation10], %s692
          %694 = dma.done %s690, 256
        $region76: #{tpu_custom_call.1} parent=71 // pred_fallthru
          _
      $region72: #{tpu_custom_call.1} parent=5 // pred_fallthru
        _
    $region6: #{tpu_custom_call.1} parent=1 // loop_footer
      %s25 = sadd.s32 1, %s21
    $region7: #{tpu_custom_call.1} parent=1 // loop_footer_branch
      %20 = sbr.rel target = $region3
    $region8: #{tpu_custom_call.1} parent=1 // loop_exit
      _
    %695 = vsyncpa [#allocation3], 1
    %s696 = scalar_lea.sflag [#allocation3], 1
    %697 = vsyncpa %s696, 1
    %698 = vsyncpa [#allocation6], 1
    %699 = vsyncpa [#allocation9], 1
    %700 = vsyncpa [#allocation4], 1
    %s701 = scalar_lea.sflag [#allocation4], 1
    %702 = vsyncpa %s701, 1

</llo_original>
